<compile_context>
chip_gen: v7x
topology: tpu7x:2x2x1
jax: 0.10.0
libtpu: 0.0.40
codegen_flags: <defaults>
</compile_context>

<pallas_src>
import jax
import jax.numpy as jnp
from jax.experimental import pallas as pl
from jax.experimental.pallas import tpu as pltpu


# ----- flat parameter layout (f32 scalars, lives in SMEM) ---------------------
B1_OFF = 0          # b1 : (10,)
W1_OFF = 10         # w1 : (10, 2) row-major  -> W1_OFF + 2*j + k
B2_OFF = 30         # b2 : (5,)
W2_OFF = 35         # w2 : (5, 10) row-major  -> W2_OFF + 10*j + k
B3_OFF = 85         # b3 : (1,)
W3_OFF = 86         # w3 : (1, 5)             -> W3_OFF + k
N_PARAMS = 91


def mlp_kernel(p_ref, x_ref, o_ref):
    # x_ref: (2, TB) -- features on sublanes, batch on lanes.
    x0 = x_ref[0:1, :]                                   # (1, TB)
    x1 = x_ref[1:2, :]                                   # (1, TB)

    # layer 1: Linear(2 -> 10) + ReLU   (20 scalar-vector MACs, fully unrolled)
    h1 = []
    for j in range(10):
        a = (p_ref[B1_OFF + j]
             + p_ref[W1_OFF + 2 * j + 0] * x0
             + p_ref[W1_OFF + 2 * j + 1] * x1)
        h1.append(jnp.maximum(a, 0.0))                   # (1, TB)

    # layer 2: Linear(10 -> 5) + ReLU   (50 scalar-vector MACs)
    h2 = []
    for j in range(5):
        a = p_ref[B2_OFF + j]
        for k in range(10):
            a = a + p_ref[W2_OFF + 10 * j + k] * h1[k]
        h2.append(jnp.maximum(a, 0.0))                   # (1, TB)

    # layer 3: Linear(5 -> 1) + tanh    (5 scalar-vector MACs; tanh -> EUP slot)
    a = p_ref[B3_OFF]
    for k in range(5):
        a = a + p_ref[W3_OFF + k] * h2[k]
    o_ref[...] = jnp.tanh(a).astype(o_ref.dtype)         # (1, TB), lane-dense store


def pack_params(params):
    """Flatten (w1,b1,w2,b2,w3,b3) [PyTorch layout] into one f32 scalar vector."""
    w1, b1, w2, b2, w3, b3 = params
    return jnp.concatenate([
        b1.reshape(-1), w1.reshape(-1),       # 10 + 20
        b2.reshape(-1), w2.reshape(-1),       # 5  + 50
        b3.reshape(-1), w3.reshape(-1),       # 1  + 5
    ]).astype(jnp.float32)                    # (N_PARAMS,)


def net_forward(x, params, *, lane_tile=256):
    """x: (B, 2) f32 -> (B, 1) f32."""
    B, F = x.shape
    assert F == 2, F
    p = pack_params(params)
    xT = jnp.transpose(x).astype(jnp.float32)            # (2, B) -- layout plumbing

    if B <= lane_tile:
        TB, Bp = B, B                                     # single step, full-dim blocks
    else:
        TB = lane_tile                                    # multiple of 128
        Bp = pl.cdiv(B, TB) * TB
        if Bp != B:
            xT = jnp.pad(xT, ((0, 0), (0, Bp - B)))

    out = pl.pallas_call(
        mlp_kernel,
        out_shape=jax.ShapeDtypeStruct((1, Bp), jnp.float32),
        grid=(Bp // TB,),
        in_specs=[
            pl.BlockSpec(memory_space=pltpu.MemorySpace.SMEM),   # params: whole vector in SMEM
            pl.BlockSpec((2, TB), lambda i: (0, i)),             # x: batch tiled on lanes
        ],
        out_specs=pl.BlockSpec((1, TB), lambda i: (0, i)),       # lane-dense output tile
        compiler_params=pltpu.CompilerParams(
            dimension_semantics=("parallel",)),                  # v7x dual-TC friendly
    )(p, xT)
    # TODO(synk): for very large B, fold the batch onto a 2-D (sublane, lane) slab
    # per feature for full 8x128 vreg occupancy instead of (1, TB) rows.
    return out[:, :B].T                                   # (B, 1)


def init_params(key):
    """Deterministic init mimicking torch.nn.Linear default (uniform +-1/sqrt(fan_in))."""
    def linear(key, fan_in, fan_out):
        kw, kb = jax.random.split(key)
        bound = 1.0 / (fan_in ** 0.5)
        w = jax.random.uniform(kw, (fan_out, fan_in), jnp.float32, -bound, bound)
        b = jax.random.uniform(kb, (fan_out,), jnp.float32, -bound, bound)
        return w, b

    k1, k2, k3 = jax.random.split(key, 3)
    w1, b1 = linear(k1, 2, 10)
    w2, b2 = linear(k2, 10, 5)
    w3, b3 = linear(k3, 5, 1)
    return w1, b1, w2, b2, w3, b3


def reference_forward(x, params):
    """Pure-JAX reference (matches the PyTorch module semantics)."""
    w1, b1, w2, b2, w3, b3 = params
    h = jnp.maximum(x @ w1.T + b1, 0.0)
    h = jnp.maximum(h @ w2.T + b2, 0.0)
    return jnp.tanh(h @ w3.T + b3)


if __name__ == "__main__":
    key = jax.random.PRNGKey(0)
    k_params, k_x = jax.random.split(key)

    params = init_params(k_params)
    x = jax.random.normal(k_x, (8, 2), jnp.float32)   # batch=8, in_features=2

    out = jax.block_until_ready(net_forward(x, params))
    ref = reference_forward(x, params)

    assert out.shape == (8, 1), out.shape
    assert jnp.allclose(out, ref, atol=1e-5, rtol=1e-5), (out, ref)

    print("KERNEL_OK")
</pallas_src>

<mosaic_0001>
module attributes {stable_mosaic.version = 11 : i64} {
  func.func @mlp_kernel(%arg0: i32, %arg1: memref<91xf32, #tpu.memory_space<smem>>, %arg2: memref<2x8xf32, #tpu.memory_space<vmem>>, %arg3: memref<1x8xf32, #tpu.memory_space<vmem>>) attributes {dimension_semantics = [#tpu.dimension_semantics<parallel>], iteration_bounds = array<i64: 1>, scalar_prefetch = 0 : i64, scratch_operands = 0 : i64, tpu.core_type = #tpu.core_type<tc>, window_params = [{transform_indices = @transform_0, window_bounds = array<i64: 91>}, {transform_indices = @transform_1, window_bounds = array<i64: 2, 8>}, {transform_indices = @transform_2, window_bounds = array<i64: 1, 8>}]} {
    %c0 = arith.constant 0 : index
    %c0_0 = arith.constant 0 : index
    %0 = vector.load %arg2[%c0, %c0_0] : memref<2x8xf32, #tpu.memory_space<vmem>>, vector<1x8xf32>
    %c1 = arith.constant 1 : index
    %c0_1 = arith.constant 0 : index
    %1 = vector.load %arg2[%c1, %c0_1] : memref<2x8xf32, #tpu.memory_space<vmem>>, vector<1x8xf32>
    %c0_2 = arith.constant 0 : index
    %2 = memref.load %arg1[%c0_2] : memref<91xf32, #tpu.memory_space<smem>>
    %c10 = arith.constant 10 : index
    %3 = memref.load %arg1[%c10] : memref<91xf32, #tpu.memory_space<smem>>
    %4 = vector.broadcast %3 : f32 to vector<1x8xf32>
    %5 = arith.mulf %4, %0 : vector<1x8xf32>
    %6 = vector.broadcast %2 : f32 to vector<1x8xf32>
    %7 = arith.addf %6, %5 : vector<1x8xf32>
    %c11 = arith.constant 11 : index
    %8 = memref.load %arg1[%c11] : memref<91xf32, #tpu.memory_space<smem>>
    %9 = vector.broadcast %8 : f32 to vector<1x8xf32>
    %10 = arith.mulf %9, %1 : vector<1x8xf32>
    %11 = arith.addf %7, %10 : vector<1x8xf32>
    %cst = arith.constant 0.000000e+00 : f32
    %12 = vector.broadcast %cst : f32 to vector<1x8xf32>
    %13 = arith.maximumf %11, %12 : vector<1x8xf32>
    %c1_3 = arith.constant 1 : index
    %14 = memref.load %arg1[%c1_3] : memref<91xf32, #tpu.memory_space<smem>>
    %c12 = arith.constant 12 : index
    %15 = memref.load %arg1[%c12] : memref<91xf32, #tpu.memory_space<smem>>
    %16 = vector.broadcast %15 : f32 to vector<1x8xf32>
    %17 = arith.mulf %16, %0 : vector<1x8xf32>
    %18 = vector.broadcast %14 : f32 to vector<1x8xf32>
    %19 = arith.addf %18, %17 : vector<1x8xf32>
    %c13 = arith.constant 13 : index
    %20 = memref.load %arg1[%c13] : memref<91xf32, #tpu.memory_space<smem>>
    %21 = vector.broadcast %20 : f32 to vector<1x8xf32>
    %22 = arith.mulf %21, %1 : vector<1x8xf32>
    %23 = arith.addf %19, %22 : vector<1x8xf32>
    %cst_4 = arith.constant 0.000000e+00 : f32
    %24 = vector.broadcast %cst_4 : f32 to vector<1x8xf32>
    %25 = arith.maximumf %23, %24 : vector<1x8xf32>
    %c2 = arith.constant 2 : index
    %26 = memref.load %arg1[%c2] : memref<91xf32, #tpu.memory_space<smem>>
    %c14 = arith.constant 14 : index
    %27 = memref.load %arg1[%c14] : memref<91xf32, #tpu.memory_space<smem>>
    %28 = vector.broadcast %27 : f32 to vector<1x8xf32>
    %29 = arith.mulf %28, %0 : vector<1x8xf32>
    %30 = vector.broadcast %26 : f32 to vector<1x8xf32>
    %31 = arith.addf %30, %29 : vector<1x8xf32>
    %c15 = arith.constant 15 : index
    %32 = memref.load %arg1[%c15] : memref<91xf32, #tpu.memory_space<smem>>
    %33 = vector.broadcast %32 : f32 to vector<1x8xf32>
    %34 = arith.mulf %33, %1 : vector<1x8xf32>
    %35 = arith.addf %31, %34 : vector<1x8xf32>
    %cst_5 = arith.constant 0.000000e+00 : f32
    %36 = vector.broadcast %cst_5 : f32 to vector<1x8xf32>
    %37 = arith.maximumf %35, %36 : vector<1x8xf32>
    %c3 = arith.constant 3 : index
    %38 = memref.load %arg1[%c3] : memref<91xf32, #tpu.memory_space<smem>>
    %c16 = arith.constant 16 : index
    %39 = memref.load %arg1[%c16] : memref<91xf32, #tpu.memory_space<smem>>
    %40 = vector.broadcast %39 : f32 to vector<1x8xf32>
    %41 = arith.mulf %40, %0 : vector<1x8xf32>
    %42 = vector.broadcast %38 : f32 to vector<1x8xf32>
    %43 = arith.addf %42, %41 : vector<1x8xf32>
    %c17 = arith.constant 17 : index
    %44 = memref.load %arg1[%c17] : memref<91xf32, #tpu.memory_space<smem>>
    %45 = vector.broadcast %44 : f32 to vector<1x8xf32>
    %46 = arith.mulf %45, %1 : vector<1x8xf32>
    %47 = arith.addf %43, %46 : vector<1x8xf32>
    %cst_6 = arith.constant 0.000000e+00 : f32
    %48 = vector.broadcast %cst_6 : f32 to vector<1x8xf32>
    %49 = arith.maximumf %47, %48 : vector<1x8xf32>
    %c4 = arith.constant 4 : index
    %50 = memref.load %arg1[%c4] : memref<91xf32, #tpu.memory_space<smem>>
    %c18 = arith.constant 18 : index
    %51 = memref.load %arg1[%c18] : memref<91xf32, #tpu.memory_space<smem>>
    %52 = vector.broadcast %51 : f32 to vector<1x8xf32>
    %53 = arith.mulf %52, %0 : vector<1x8xf32>
    %54 = vector.broadcast %50 : f32 to vector<1x8xf32>
    %55 = arith.addf %54, %53 : vector<1x8xf32>
    %c19 = arith.constant 19 : index
    %56 = memref.load %arg1[%c19] : memref<91xf32, #tpu.memory_space<smem>>
    %57 = vector.broadcast %56 : f32 to vector<1x8xf32>
    %58 = arith.mulf %57, %1 : vector<1x8xf32>
    %59 = arith.addf %55, %58 : vector<1x8xf32>
    %cst_7 = arith.constant 0.000000e+00 : f32
    %60 = vector.broadcast %cst_7 : f32 to vector<1x8xf32>
    %61 = arith.maximumf %59, %60 : vector<1x8xf32>
    %c5 = arith.constant 5 : index
    %62 = memref.load %arg1[%c5] : memref<91xf32, #tpu.memory_space<smem>>
    %c20 = arith.constant 20 : index
    %63 = memref.load %arg1[%c20] : memref<91xf32, #tpu.memory_space<smem>>
    %64 = vector.broadcast %63 : f32 to vector<1x8xf32>
    %65 = arith.mulf %64, %0 : vector<1x8xf32>
    %66 = vector.broadcast %62 : f32 to vector<1x8xf32>
    %67 = arith.addf %66, %65 : vector<1x8xf32>
    %c21 = arith.constant 21 : index
    %68 = memref.load %arg1[%c21] : memref<91xf32, #tpu.memory_space<smem>>
    %69 = vector.broadcast %68 : f32 to vector<1x8xf32>
    %70 = arith.mulf %69, %1 : vector<1x8xf32>
    %71 = arith.addf %67, %70 : vector<1x8xf32>
    %cst_8 = arith.constant 0.000000e+00 : f32
    %72 = vector.broadcast %cst_8 : f32 to vector<1x8xf32>
    %73 = arith.maximumf %71, %72 : vector<1x8xf32>
    %c6 = arith.constant 6 : index
    %74 = memref.load %arg1[%c6] : memref<91xf32, #tpu.memory_space<smem>>
    %c22 = arith.constant 22 : index
    %75 = memref.load %arg1[%c22] : memref<91xf32, #tpu.memory_space<smem>>
    %76 = vector.broadcast %75 : f32 to vector<1x8xf32>
    %77 = arith.mulf %76, %0 : vector<1x8xf32>
    %78 = vector.broadcast %74 : f32 to vector<1x8xf32>
    %79 = arith.addf %78, %77 : vector<1x8xf32>
    %c23 = arith.constant 23 : index
    %80 = memref.load %arg1[%c23] : memref<91xf32, #tpu.memory_space<smem>>
    %81 = vector.broadcast %80 : f32 to vector<1x8xf32>
    %82 = arith.mulf %81, %1 : vector<1x8xf32>
    %83 = arith.addf %79, %82 : vector<1x8xf32>
    %cst_9 = arith.constant 0.000000e+00 : f32
    %84 = vector.broadcast %cst_9 : f32 to vector<1x8xf32>
    %85 = arith.maximumf %83, %84 : vector<1x8xf32>
    %c7 = arith.constant 7 : index
    %86 = memref.load %arg1[%c7] : memref<91xf32, #tpu.memory_space<smem>>
    %c24 = arith.constant 24 : index
    %87 = memref.load %arg1[%c24] : memref<91xf32, #tpu.memory_space<smem>>
    %88 = vector.broadcast %87 : f32 to vector<1x8xf32>
    %89 = arith.mulf %88, %0 : vector<1x8xf32>
    %90 = vector.broadcast %86 : f32 to vector<1x8xf32>
    %91 = arith.addf %90, %89 : vector<1x8xf32>
    %c25 = arith.constant 25 : index
    %92 = memref.load %arg1[%c25] : memref<91xf32, #tpu.memory_space<smem>>
    %93 = vector.broadcast %92 : f32 to vector<1x8xf32>
    %94 = arith.mulf %93, %1 : vector<1x8xf32>
    %95 = arith.addf %91, %94 : vector<1x8xf32>
    %cst_10 = arith.constant 0.000000e+00 : f32
    %96 = vector.broadcast %cst_10 : f32 to vector<1x8xf32>
    %97 = arith.maximumf %95, %96 : vector<1x8xf32>
    %c8 = arith.constant 8 : index
    %98 = memref.load %arg1[%c8] : memref<91xf32, #tpu.memory_space<smem>>
    %c26 = arith.constant 26 : index
    %99 = memref.load %arg1[%c26] : memref<91xf32, #tpu.memory_space<smem>>
    %100 = vector.broadcast %99 : f32 to vector<1x8xf32>
    %101 = arith.mulf %100, %0 : vector<1x8xf32>
    %102 = vector.broadcast %98 : f32 to vector<1x8xf32>
    %103 = arith.addf %102, %101 : vector<1x8xf32>
    %c27 = arith.constant 27 : index
    %104 = memref.load %arg1[%c27] : memref<91xf32, #tpu.memory_space<smem>>
    %105 = vector.broadcast %104 : f32 to vector<1x8xf32>
    %106 = arith.mulf %105, %1 : vector<1x8xf32>
    %107 = arith.addf %103, %106 : vector<1x8xf32>
    %cst_11 = arith.constant 0.000000e+00 : f32
    %108 = vector.broadcast %cst_11 : f32 to vector<1x8xf32>
    %109 = arith.maximumf %107, %108 : vector<1x8xf32>
    %c9 = arith.constant 9 : index
    %110 = memref.load %arg1[%c9] : memref<91xf32, #tpu.memory_space<smem>>
    %c28 = arith.constant 28 : index
    %111 = memref.load %arg1[%c28] : memref<91xf32, #tpu.memory_space<smem>>
    %112 = vector.broadcast %111 : f32 to vector<1x8xf32>
    %113 = arith.mulf %112, %0 : vector<1x8xf32>
    %114 = vector.broadcast %110 : f32 to vector<1x8xf32>
    %115 = arith.addf %114, %113 : vector<1x8xf32>
    %c29 = arith.constant 29 : index
    %116 = memref.load %arg1[%c29] : memref<91xf32, #tpu.memory_space<smem>>
    %117 = vector.broadcast %116 : f32 to vector<1x8xf32>
    %118 = arith.mulf %117, %1 : vector<1x8xf32>
    %119 = arith.addf %115, %118 : vector<1x8xf32>
    %cst_12 = arith.constant 0.000000e+00 : f32
    %120 = vector.broadcast %cst_12 : f32 to vector<1x8xf32>
    %121 = arith.maximumf %119, %120 : vector<1x8xf32>
    %c30 = arith.constant 30 : index
    %122 = memref.load %arg1[%c30] : memref<91xf32, #tpu.memory_space<smem>>
    %c35 = arith.constant 35 : index
    %123 = memref.load %arg1[%c35] : memref<91xf32, #tpu.memory_space<smem>>
    %124 = vector.broadcast %123 : f32 to vector<1x8xf32>
    %125 = arith.mulf %124, %13 : vector<1x8xf32>
    %126 = vector.broadcast %122 : f32 to vector<1x8xf32>
    %127 = arith.addf %126, %125 : vector<1x8xf32>
    %c36 = arith.constant 36 : index
    %128 = memref.load %arg1[%c36] : memref<91xf32, #tpu.memory_space<smem>>
    %129 = vector.broadcast %128 : f32 to vector<1x8xf32>
    %130 = arith.mulf %129, %25 : vector<1x8xf32>
    %131 = arith.addf %127, %130 : vector<1x8xf32>
    %c37 = arith.constant 37 : index
    %132 = memref.load %arg1[%c37] : memref<91xf32, #tpu.memory_space<smem>>
    %133 = vector.broadcast %132 : f32 to vector<1x8xf32>
    %134 = arith.mulf %133, %37 : vector<1x8xf32>
    %135 = arith.addf %131, %134 : vector<1x8xf32>
    %c38 = arith.constant 38 : index
    %136 = memref.load %arg1[%c38] : memref<91xf32, #tpu.memory_space<smem>>
    %137 = vector.broadcast %136 : f32 to vector<1x8xf32>
    %138 = arith.mulf %137, %49 : vector<1x8xf32>
    %139 = arith.addf %135, %138 : vector<1x8xf32>
    %c39 = arith.constant 39 : index
    %140 = memref.load %arg1[%c39] : memref<91xf32, #tpu.memory_space<smem>>
    %141 = vector.broadcast %140 : f32 to vector<1x8xf32>
    %142 = arith.mulf %141, %61 : vector<1x8xf32>
    %143 = arith.addf %139, %142 : vector<1x8xf32>
    %c40 = arith.constant 40 : index
    %144 = memref.load %arg1[%c40] : memref<91xf32, #tpu.memory_space<smem>>
    %145 = vector.broadcast %144 : f32 to vector<1x8xf32>
    %146 = arith.mulf %145, %73 : vector<1x8xf32>
    %147 = arith.addf %143, %146 : vector<1x8xf32>
    %c41 = arith.constant 41 : index
    %148 = memref.load %arg1[%c41] : memref<91xf32, #tpu.memory_space<smem>>
    %149 = vector.broadcast %148 : f32 to vector<1x8xf32>
    %150 = arith.mulf %149, %85 : vector<1x8xf32>
    %151 = arith.addf %147, %150 : vector<1x8xf32>
    %c42 = arith.constant 42 : index
    %152 = memref.load %arg1[%c42] : memref<91xf32, #tpu.memory_space<smem>>
    %153 = vector.broadcast %152 : f32 to vector<1x8xf32>
    %154 = arith.mulf %153, %97 : vector<1x8xf32>
    %155 = arith.addf %151, %154 : vector<1x8xf32>
    %c43 = arith.constant 43 : index
    %156 = memref.load %arg1[%c43] : memref<91xf32, #tpu.memory_space<smem>>
    %157 = vector.broadcast %156 : f32 to vector<1x8xf32>
    %158 = arith.mulf %157, %109 : vector<1x8xf32>
    %159 = arith.addf %155, %158 : vector<1x8xf32>
    %c44 = arith.constant 44 : index
    %160 = memref.load %arg1[%c44] : memref<91xf32, #tpu.memory_space<smem>>
    %161 = vector.broadcast %160 : f32 to vector<1x8xf32>
    %162 = arith.mulf %161, %121 : vector<1x8xf32>
    %163 = arith.addf %159, %162 : vector<1x8xf32>
    %cst_13 = arith.constant 0.000000e+00 : f32
    %164 = vector.broadcast %cst_13 : f32 to vector<1x8xf32>
    %165 = arith.maximumf %163, %164 : vector<1x8xf32>
    %c31 = arith.constant 31 : index
    %166 = memref.load %arg1[%c31] : memref<91xf32, #tpu.memory_space<smem>>
    %c45 = arith.constant 45 : index
    %167 = memref.load %arg1[%c45] : memref<91xf32, #tpu.memory_space<smem>>
    %168 = vector.broadcast %167 : f32 to vector<1x8xf32>
    %169 = arith.mulf %168, %13 : vector<1x8xf32>
    %170 = vector.broadcast %166 : f32 to vector<1x8xf32>
    %171 = arith.addf %170, %169 : vector<1x8xf32>
    %c46 = arith.constant 46 : index
    %172 = memref.load %arg1[%c46] : memref<91xf32, #tpu.memory_space<smem>>
    %173 = vector.broadcast %172 : f32 to vector<1x8xf32>
    %174 = arith.mulf %173, %25 : vector<1x8xf32>
    %175 = arith.addf %171, %174 : vector<1x8xf32>
    %c47 = arith.constant 47 : index
    %176 = memref.load %arg1[%c47] : memref<91xf32, #tpu.memory_space<smem>>
    %177 = vector.broadcast %176 : f32 to vector<1x8xf32>
    %178 = arith.mulf %177, %37 : vector<1x8xf32>
    %179 = arith.addf %175, %178 : vector<1x8xf32>
    %c48 = arith.constant 48 : index
    %180 = memref.load %arg1[%c48] : memref<91xf32, #tpu.memory_space<smem>>
    %181 = vector.broadcast %180 : f32 to vector<1x8xf32>
    %182 = arith.mulf %181, %49 : vector<1x8xf32>
    %183 = arith.addf %179, %182 : vector<1x8xf32>
    %c49 = arith.constant 49 : index
    %184 = memref.load %arg1[%c49] : memref<91xf32, #tpu.memory_space<smem>>
    %185 = vector.broadcast %184 : f32 to vector<1x8xf32>
    %186 = arith.mulf %185, %61 : vector<1x8xf32>
    %187 = arith.addf %183, %186 : vector<1x8xf32>
    %c50 = arith.constant 50 : index
    %188 = memref.load %arg1[%c50] : memref<91xf32, #tpu.memory_space<smem>>
    %189 = vector.broadcast %188 : f32 to vector<1x8xf32>
    %190 = arith.mulf %189, %73 : vector<1x8xf32>
    %191 = arith.addf %187, %190 : vector<1x8xf32>
    %c51 = arith.constant 51 : index
    %192 = memref.load %arg1[%c51] : memref<91xf32, #tpu.memory_space<smem>>
    %193 = vector.broadcast %192 : f32 to vector<1x8xf32>
    %194 = arith.mulf %193, %85 : vector<1x8xf32>
    %195 = arith.addf %191, %194 : vector<1x8xf32>
    %c52 = arith.constant 52 : index
    %196 = memref.load %arg1[%c52] : memref<91xf32, #tpu.memory_space<smem>>
    %197 = vector.broadcast %196 : f32 to vector<1x8xf32>
    %198 = arith.mulf %197, %97 : vector<1x8xf32>
    %199 = arith.addf %195, %198 : vector<1x8xf32>
    %c53 = arith.constant 53 : index
    %200 = memref.load %arg1[%c53] : memref<91xf32, #tpu.memory_space<smem>>
    %201 = vector.broadcast %200 : f32 to vector<1x8xf32>
    %202 = arith.mulf %201, %109 : vector<1x8xf32>
    %203 = arith.addf %199, %202 : vector<1x8xf32>
    %c54 = arith.constant 54 : index
    %204 = memref.load %arg1[%c54] : memref<91xf32, #tpu.memory_space<smem>>
    %205 = vector.broadcast %204 : f32 to vector<1x8xf32>
    %206 = arith.mulf %205, %121 : vector<1x8xf32>
    %207 = arith.addf %203, %206 : vector<1x8xf32>
    %cst_14 = arith.constant 0.000000e+00 : f32
    %208 = vector.broadcast %cst_14 : f32 to vector<1x8xf32>
    %209 = arith.maximumf %207, %208 : vector<1x8xf32>
    %c32 = arith.constant 32 : index
    %210 = memref.load %arg1[%c32] : memref<91xf32, #tpu.memory_space<smem>>
    %c55 = arith.constant 55 : index
    %211 = memref.load %arg1[%c55] : memref<91xf32, #tpu.memory_space<smem>>
    %212 = vector.broadcast %211 : f32 to vector<1x8xf32>
    %213 = arith.mulf %212, %13 : vector<1x8xf32>
    %214 = vector.broadcast %210 : f32 to vector<1x8xf32>
    %215 = arith.addf %214, %213 : vector<1x8xf32>
    %c56 = arith.constant 56 : index
    %216 = memref.load %arg1[%c56] : memref<91xf32, #tpu.memory_space<smem>>
    %217 = vector.broadcast %216 : f32 to vector<1x8xf32>
    %218 = arith.mulf %217, %25 : vector<1x8xf32>
    %219 = arith.addf %215, %218 : vector<1x8xf32>
    %c57 = arith.constant 57 : index
    %220 = memref.load %arg1[%c57] : memref<91xf32, #tpu.memory_space<smem>>
    %221 = vector.broadcast %220 : f32 to vector<1x8xf32>
    %222 = arith.mulf %221, %37 : vector<1x8xf32>
    %223 = arith.addf %219, %222 : vector<1x8xf32>
    %c58 = arith.constant 58 : index
    %224 = memref.load %arg1[%c58] : memref<91xf32, #tpu.memory_space<smem>>
    %225 = vector.broadcast %224 : f32 to vector<1x8xf32>
    %226 = arith.mulf %225, %49 : vector<1x8xf32>
    %227 = arith.addf %223, %226 : vector<1x8xf32>
    %c59 = arith.constant 59 : index
    %228 = memref.load %arg1[%c59] : memref<91xf32, #tpu.memory_space<smem>>
    %229 = vector.broadcast %228 : f32 to vector<1x8xf32>
    %230 = arith.mulf %229, %61 : vector<1x8xf32>
    %231 = arith.addf %227, %230 : vector<1x8xf32>
    %c60 = arith.constant 60 : index
    %232 = memref.load %arg1[%c60] : memref<91xf32, #tpu.memory_space<smem>>
    %233 = vector.broadcast %232 : f32 to vector<1x8xf32>
    %234 = arith.mulf %233, %73 : vector<1x8xf32>
    %235 = arith.addf %231, %234 : vector<1x8xf32>
    %c61 = arith.constant 61 : index
    %236 = memref.load %arg1[%c61] : memref<91xf32, #tpu.memory_space<smem>>
    %237 = vector.broadcast %236 : f32 to vector<1x8xf32>
    %238 = arith.mulf %237, %85 : vector<1x8xf32>
    %239 = arith.addf %235, %238 : vector<1x8xf32>
    %c62 = arith.constant 62 : index
    %240 = memref.load %arg1[%c62] : memref<91xf32, #tpu.memory_space<smem>>
    %241 = vector.broadcast %240 : f32 to vector<1x8xf32>
    %242 = arith.mulf %241, %97 : vector<1x8xf32>
    %243 = arith.addf %239, %242 : vector<1x8xf32>
    %c63 = arith.constant 63 : index
    %244 = memref.load %arg1[%c63] : memref<91xf32, #tpu.memory_space<smem>>
    %245 = vector.broadcast %244 : f32 to vector<1x8xf32>
    %246 = arith.mulf %245, %109 : vector<1x8xf32>
    %247 = arith.addf %243, %246 : vector<1x8xf32>
    %c64 = arith.constant 64 : index
    %248 = memref.load %arg1[%c64] : memref<91xf32, #tpu.memory_space<smem>>
    %249 = vector.broadcast %248 : f32 to vector<1x8xf32>
    %250 = arith.mulf %249, %121 : vector<1x8xf32>
    %251 = arith.addf %247, %250 : vector<1x8xf32>
    %cst_15 = arith.constant 0.000000e+00 : f32
    %252 = vector.broadcast %cst_15 : f32 to vector<1x8xf32>
    %253 = arith.maximumf %251, %252 : vector<1x8xf32>
    %c33 = arith.constant 33 : index
    %254 = memref.load %arg1[%c33] : memref<91xf32, #tpu.memory_space<smem>>
    %c65 = arith.constant 65 : index
    %255 = memref.load %arg1[%c65] : memref<91xf32, #tpu.memory_space<smem>>
    %256 = vector.broadcast %255 : f32 to vector<1x8xf32>
    %257 = arith.mulf %256, %13 : vector<1x8xf32>
    %258 = vector.broadcast %254 : f32 to vector<1x8xf32>
    %259 = arith.addf %258, %257 : vector<1x8xf32>
    %c66 = arith.constant 66 : index
    %260 = memref.load %arg1[%c66] : memref<91xf32, #tpu.memory_space<smem>>
    %261 = vector.broadcast %260 : f32 to vector<1x8xf32>
    %262 = arith.mulf %261, %25 : vector<1x8xf32>
    %263 = arith.addf %259, %262 : vector<1x8xf32>
    %c67 = arith.constant 67 : index
    %264 = memref.load %arg1[%c67] : memref<91xf32, #tpu.memory_space<smem>>
    %265 = vector.broadcast %264 : f32 to vector<1x8xf32>
    %266 = arith.mulf %265, %37 : vector<1x8xf32>
    %267 = arith.addf %263, %266 : vector<1x8xf32>
    %c68 = arith.constant 68 : index
    %268 = memref.load %arg1[%c68] : memref<91xf32, #tpu.memory_space<smem>>
    %269 = vector.broadcast %268 : f32 to vector<1x8xf32>
    %270 = arith.mulf %269, %49 : vector<1x8xf32>
    %271 = arith.addf %267, %270 : vector<1x8xf32>
    %c69 = arith.constant 69 : index
    %272 = memref.load %arg1[%c69] : memref<91xf32, #tpu.memory_space<smem>>
    %273 = vector.broadcast %272 : f32 to vector<1x8xf32>
    %274 = arith.mulf %273, %61 : vector<1x8xf32>
    %275 = arith.addf %271, %274 : vector<1x8xf32>
    %c70 = arith.constant 70 : index
    %276 = memref.load %arg1[%c70] : memref<91xf32, #tpu.memory_space<smem>>
    %277 = vector.broadcast %276 : f32 to vector<1x8xf32>
    %278 = arith.mulf %277, %73 : vector<1x8xf32>
    %279 = arith.addf %275, %278 : vector<1x8xf32>
    %c71 = arith.constant 71 : index
    %280 = memref.load %arg1[%c71] : memref<91xf32, #tpu.memory_space<smem>>
    %281 = vector.broadcast %280 : f32 to vector<1x8xf32>
    %282 = arith.mulf %281, %85 : vector<1x8xf32>
    %283 = arith.addf %279, %282 : vector<1x8xf32>
    %c72 = arith.constant 72 : index
    %284 = memref.load %arg1[%c72] : memref<91xf32, #tpu.memory_space<smem>>
    %285 = vector.broadcast %284 : f32 to vector<1x8xf32>
    %286 = arith.mulf %285, %97 : vector<1x8xf32>
    %287 = arith.addf %283, %286 : vector<1x8xf32>
    %c73 = arith.constant 73 : index
    %288 = memref.load %arg1[%c73] : memref<91xf32, #tpu.memory_space<smem>>
    %289 = vector.broadcast %288 : f32 to vector<1x8xf32>
    %290 = arith.mulf %289, %109 : vector<1x8xf32>
    %291 = arith.addf %287, %290 : vector<1x8xf32>
    %c74 = arith.constant 74 : index
    %292 = memref.load %arg1[%c74] : memref<91xf32, #tpu.memory_space<smem>>
    %293 = vector.broadcast %292 : f32 to vector<1x8xf32>
    %294 = arith.mulf %293, %121 : vector<1x8xf32>
    %295 = arith.addf %291, %294 : vector<1x8xf32>
    %cst_16 = arith.constant 0.000000e+00 : f32
    %296 = vector.broadcast %cst_16 : f32 to vector<1x8xf32>
    %297 = arith.maximumf %295, %296 : vector<1x8xf32>
    %c34 = arith.constant 34 : index
    %298 = memref.load %arg1[%c34] : memref<91xf32, #tpu.memory_space<smem>>
    %c75 = arith.constant 75 : index
    %299 = memref.load %arg1[%c75] : memref<91xf32, #tpu.memory_space<smem>>
    %300 = vector.broadcast %299 : f32 to vector<1x8xf32>
    %301 = arith.mulf %300, %13 : vector<1x8xf32>
    %302 = vector.broadcast %298 : f32 to vector<1x8xf32>
    %303 = arith.addf %302, %301 : vector<1x8xf32>
    %c76 = arith.constant 76 : index
    %304 = memref.load %arg1[%c76] : memref<91xf32, #tpu.memory_space<smem>>
    %305 = vector.broadcast %304 : f32 to vector<1x8xf32>
    %306 = arith.mulf %305, %25 : vector<1x8xf32>
    %307 = arith.addf %303, %306 : vector<1x8xf32>
    %c77 = arith.constant 77 : index
    %308 = memref.load %arg1[%c77] : memref<91xf32, #tpu.memory_space<smem>>
    %309 = vector.broadcast %308 : f32 to vector<1x8xf32>
    %310 = arith.mulf %309, %37 : vector<1x8xf32>
    %311 = arith.addf %307, %310 : vector<1x8xf32>
    %c78 = arith.constant 78 : index
    %312 = memref.load %arg1[%c78] : memref<91xf32, #tpu.memory_space<smem>>
    %313 = vector.broadcast %312 : f32 to vector<1x8xf32>
    %314 = arith.mulf %313, %49 : vector<1x8xf32>
    %315 = arith.addf %311, %314 : vector<1x8xf32>
    %c79 = arith.constant 79 : index
    %316 = memref.load %arg1[%c79] : memref<91xf32, #tpu.memory_space<smem>>
    %317 = vector.broadcast %316 : f32 to vector<1x8xf32>
    %318 = arith.mulf %317, %61 : vector<1x8xf32>
    %319 = arith.addf %315, %318 : vector<1x8xf32>
    %c80 = arith.constant 80 : index
    %320 = memref.load %arg1[%c80] : memref<91xf32, #tpu.memory_space<smem>>
    %321 = vector.broadcast %320 : f32 to vector<1x8xf32>
    %322 = arith.mulf %321, %73 : vector<1x8xf32>
    %323 = arith.addf %319, %322 : vector<1x8xf32>
    %c81 = arith.constant 81 : index
    %324 = memref.load %arg1[%c81] : memref<91xf32, #tpu.memory_space<smem>>
    %325 = vector.broadcast %324 : f32 to vector<1x8xf32>
    %326 = arith.mulf %325, %85 : vector<1x8xf32>
    %327 = arith.addf %323, %326 : vector<1x8xf32>
    %c82 = arith.constant 82 : index
    %328 = memref.load %arg1[%c82] : memref<91xf32, #tpu.memory_space<smem>>
    %329 = vector.broadcast %328 : f32 to vector<1x8xf32>
    %330 = arith.mulf %329, %97 : vector<1x8xf32>
    %331 = arith.addf %327, %330 : vector<1x8xf32>
    %c83 = arith.constant 83 : index
    %332 = memref.load %arg1[%c83] : memref<91xf32, #tpu.memory_space<smem>>
    %333 = vector.broadcast %332 : f32 to vector<1x8xf32>
    %334 = arith.mulf %333, %109 : vector<1x8xf32>
    %335 = arith.addf %331, %334 : vector<1x8xf32>
    %c84 = arith.constant 84 : index
    %336 = memref.load %arg1[%c84] : memref<91xf32, #tpu.memory_space<smem>>
    %337 = vector.broadcast %336 : f32 to vector<1x8xf32>
    %338 = arith.mulf %337, %121 : vector<1x8xf32>
    %339 = arith.addf %335, %338 : vector<1x8xf32>
    %cst_17 = arith.constant 0.000000e+00 : f32
    %340 = vector.broadcast %cst_17 : f32 to vector<1x8xf32>
    %341 = arith.maximumf %339, %340 : vector<1x8xf32>
    %c85 = arith.constant 85 : index
    %342 = memref.load %arg1[%c85] : memref<91xf32, #tpu.memory_space<smem>>
    %c86 = arith.constant 86 : index
    %343 = memref.load %arg1[%c86] : memref<91xf32, #tpu.memory_space<smem>>
    %344 = vector.broadcast %343 : f32 to vector<1x8xf32>
    %345 = arith.mulf %344, %165 : vector<1x8xf32>
    %346 = vector.broadcast %342 : f32 to vector<1x8xf32>
    %347 = arith.addf %346, %345 : vector<1x8xf32>
    %c87 = arith.constant 87 : index
    %348 = memref.load %arg1[%c87] : memref<91xf32, #tpu.memory_space<smem>>
    %349 = vector.broadcast %348 : f32 to vector<1x8xf32>
    %350 = arith.mulf %349, %209 : vector<1x8xf32>
    %351 = arith.addf %347, %350 : vector<1x8xf32>
    %c88 = arith.constant 88 : index
    %352 = memref.load %arg1[%c88] : memref<91xf32, #tpu.memory_space<smem>>
    %353 = vector.broadcast %352 : f32 to vector<1x8xf32>
    %354 = arith.mulf %353, %253 : vector<1x8xf32>
    %355 = arith.addf %351, %354 : vector<1x8xf32>
    %c89 = arith.constant 89 : index
    %356 = memref.load %arg1[%c89] : memref<91xf32, #tpu.memory_space<smem>>
    %357 = vector.broadcast %356 : f32 to vector<1x8xf32>
    %358 = arith.mulf %357, %297 : vector<1x8xf32>
    %359 = arith.addf %355, %358 : vector<1x8xf32>
    %c90 = arith.constant 90 : index
    %360 = memref.load %arg1[%c90] : memref<91xf32, #tpu.memory_space<smem>>
    %361 = vector.broadcast %360 : f32 to vector<1x8xf32>
    %362 = arith.mulf %361, %341 : vector<1x8xf32>
    %363 = arith.addf %359, %362 : vector<1x8xf32>
    %364 = math.tanh %363 : vector<1x8xf32>
    %c0_18 = arith.constant 0 : index
    %c0_19 = arith.constant 0 : index
    %365 = vector.load %arg3[%c0_18, %c0_19] : memref<1x8xf32, #tpu.memory_space<vmem>>, vector<1x8xf32>
    tpu.vector_store %arg3[%c0_18, %c0_19], %364 {strides = array<i32>} : memref<1x8xf32, #tpu.memory_space<vmem>>, vector<1x8xf32>,
    return
  }
  func.func @transform_0(%arg0: i32) -> i32 {
    %c0_i32 = arith.constant 0 : i32
    %c0_i32_0 = arith.constant 0 : i32
    return %c0_i32 : i32
  }
  func.func @transform_1(%arg0: i32) -> (i32, i32) {
    %c0_i32 = arith.constant 0 : i32
    %c0_i32_0 = arith.constant 0 : i32
    return %c0_i32, %arg0 : i32, i32
  }
  func.func @transform_2(%arg0: i32) -> (i32, i32) {
    %c0_i32 = arith.constant 0 : i32
    %c0_i32_0 = arith.constant 0 : i32
    return %c0_i32, %arg0 : i32, i32
  }
}

</mosaic_0001>

<llo_original>
// kernel: tpu_custom_call.1
$region0: #{tpu_custom_call.1}
  #allocation0 [shape = 'u32[]', space=smem, size = 0x4, offset = 0x4, fixed_abs, tag = 'smem constant byte address 0x4 - core index']
  #allocation1 [shape = 'u32[144,128]{1,0:T(1,128)}', space=vmem, size = 0x12000, scoped, tag = 'internal scratch']
  %s0 = inlined_call_operand.hbm [shape: f32[91], index: 0, kind: input, shape index: {}]
  %s1 = inlined_call_operand.vmem [shape: f32[2,8], index: 1, kind: input, shape index: {}]
  %s2 = inlined_call_operand.hbm [shape: f32[1,8], index: 2, kind: output, shape index: {}]
  %s3 = sld [smem:[#allocation0]]
  $region22: #{tpu_custom_call.1} parent=0
    _
  %s5 = ssub.s32 1, %s3
  %s6 = scalar_select 0, %s5, %s3
  $region1: #{tpu_custom_call.1} parent=0
    #allocation2 [shape = 'u8[512]{0}', space=smem, size = 0x200, scoped, tag = 'input window, operand 0, single buffered']
    #allocation3 [shape = 's32[1]{0}', space=sflag, size = 0x4, scoped, tag = 'scoped memory for tpu_custom_call.1']
    #allocation4 [shape = 's32[1]{0}', space=sflag, size = 0x4, scoped, tag = 'scoped memory for tpu_custom_call.1']
    #allocation5 [shape = 'u8[512]{0}', space=vmem, size = 0x400, scoped, tag = 'output window, operand 0, single buffered']
    %7 = vsyncpa [#allocation4], 0
    %8 = vsyncpa [#allocation3], 0
    // Predicated region
    $region2: #{tpu_custom_call.1} parent=1 // pred_check
      _
    $region3: #{tpu_custom_call.1} parent=1 // pred_check_branch
      %10 = sbr.rel (0) target = $region5
    $region4: #{tpu_custom_call.1} parent=1 // pred_region
      %s12 = ssub.s32 16, 16
      %13 = vsyncadd [#allocation4], %s12
      %16 = dma.hbm_to_smem %s0, 16, [#allocation2], [#allocation4]
    $region5: #{tpu_custom_call.1} parent=1 // pred_fallthru
      _
    // Predicated region
    $region6: #{tpu_custom_call.1} parent=1 // pred_check
      _
    $region7: #{tpu_custom_call.1} parent=1 // pred_check_branch
      %18 = sbr.rel (0) target = $region9
    $region8: #{tpu_custom_call.1} parent=1 // pred_region
      _
    $region9: #{tpu_custom_call.1} parent=1 // pred_fallthru
      _
    // Predicated region
    $region10: #{tpu_custom_call.1} parent=1 // pred_check
      _
    $region11: #{tpu_custom_call.1} parent=1 // pred_check_branch
      %20 = sbr.rel (0) target = $region13
    $region12: #{tpu_custom_call.1} parent=1 // pred_region
      %21 = dma.done [#allocation4], 16
    $region13: #{tpu_custom_call.1} parent=1 // pred_fallthru
      _
    %22 = sfence
    %v23 = vld [vmem:[%s1] sm:$0x1]
    %v24 = vld [vmem:[%s1 + $0x1] sm:$0x1]
    %s25 = sld [smem:[#allocation2]]
    %s26 = sld [smem:[#allocation2 + $0xa]]
    %v27 = vstv %s26
    %v28 = vmul.f32 %v27, %v23
    %v29 = vstv %s25
    %v30 = vadd.f32 %v29, %v28
    %s31 = sld [smem:[#allocation2 + $0xb]]
    %v32 = vstv %s31
    %v33 = vmul.f32 %v32, %v24
    %v34 = vadd.f32 %v30, %v33
    %v35 = vmax.f32 %v34, 0.0
    %s36 = sld [smem:[#allocation2 + $0x1]]
    %s37 = sld [smem:[#allocation2 + $0xc]]
    %v38 = vstv %s37
    %v39 = vmul.f32 %v38, %v23
    %v40 = vstv %s36
    %v41 = vadd.f32 %v40, %v39
    %s42 = sld [smem:[#allocation2 + $0xd]]
    %v43 = vstv %s42
    %v44 = vmul.f32 %v43, %v24
    %v45 = vadd.f32 %v41, %v44
    %v46 = vmax.f32 %v45, 0.0
    %s47 = sld [smem:[#allocation2 + $0x2]]
    %s48 = sld [smem:[#allocation2 + $0xe]]
    %v49 = vstv %s48
    %v50 = vmul.f32 %v49, %v23
    %v51 = vstv %s47
    %v52 = vadd.f32 %v51, %v50
    %s53 = sld [smem:[#allocation2 + $0xf]]
    %v54 = vstv %s53
    %v55 = vmul.f32 %v54, %v24
    %v56 = vadd.f32 %v52, %v55
    %v57 = vmax.f32 %v56, 0.0
    %s58 = sld [smem:[#allocation2 + $0x3]]
    %s59 = sld [smem:[#allocation2 + $0x10]]
    %v60 = vstv %s59
    %v61 = vmul.f32 %v60, %v23
    %v62 = vstv %s58
    %v63 = vadd.f32 %v62, %v61
    %s64 = sld [smem:[#allocation2 + $0x11]]
    %v65 = vstv %s64
    %v66 = vmul.f32 %v65, %v24
    %v67 = vadd.f32 %v63, %v66
    %v68 = vmax.f32 %v67, 0.0
    %s69 = sld [smem:[#allocation2 + $0x4]]
    %s70 = sld [smem:[#allocation2 + $0x12]]
    %v71 = vstv %s70
    %v72 = vmul.f32 %v71, %v23
    %v73 = vstv %s69
    %v74 = vadd.f32 %v73, %v72
    %s75 = sld [smem:[#allocation2 + $0x13]]
    %v76 = vstv %s75
    %v77 = vmul.f32 %v76, %v24
    %v78 = vadd.f32 %v74, %v77
    %v79 = vmax.f32 %v78, 0.0
    %s80 = sld [smem:[#allocation2 + $0x5]]
    %s81 = sld [smem:[#allocation2 + $0x14]]
    %v82 = vstv %s81
    %v83 = vmul.f32 %v82, %v23
    %v84 = vstv %s80
    %v85 = vadd.f32 %v84, %v83
    %s86 = sld [smem:[#allocation2 + $0x15]]
    %v87 = vstv %s86
    %v88 = vmul.f32 %v87, %v24
    %v89 = vadd.f32 %v85, %v88
    %v90 = vmax.f32 %v89, 0.0
    %s91 = sld [smem:[#allocation2 + $0x6]]
    %s92 = sld [smem:[#allocation2 + $0x16]]
    %v93 = vstv %s92
    %v94 = vmul.f32 %v93, %v23
    %v95 = vstv %s91
    %v96 = vadd.f32 %v95, %v94
    %s97 = sld [smem:[#allocation2 + $0x17]]
    %v98 = vstv %s97
    %v99 = vmul.f32 %v98, %v24
    %v100 = vadd.f32 %v96, %v99
    %v101 = vmax.f32 %v100, 0.0
    %s102 = sld [smem:[#allocation2 + $0x7]]
    %s103 = sld [smem:[#allocation2 + $0x18]]
    %v104 = vstv %s103
    %v105 = vmul.f32 %v104, %v23
    %v106 = vstv %s102
    %v107 = vadd.f32 %v106, %v105
    %s108 = sld [smem:[#allocation2 + $0x19]]
    %v109 = vstv %s108
    %v110 = vmul.f32 %v109, %v24
    %v111 = vadd.f32 %v107, %v110
    %v112 = vmax.f32 %v111, 0.0
    %s113 = sld [smem:[#allocation2 + $0x8]]
    %s114 = sld [smem:[#allocation2 + $0x1a]]
    %v115 = vstv %s114
    %v116 = vmul.f32 %v115, %v23
    %v117 = vstv %s113
    %v118 = vadd.f32 %v117, %v116
    %s119 = sld [smem:[#allocation2 + $0x1b]]
    %v120 = vstv %s119
    %v121 = vmul.f32 %v120, %v24
    %v122 = vadd.f32 %v118, %v121
    %v123 = vmax.f32 %v122, 0.0
    %s124 = sld [smem:[#allocation2 + $0x9]]
    %s125 = sld [smem:[#allocation2 + $0x1c]]
    %v126 = vstv %s125
    %v127 = vmul.f32 %v126, %v23
    %v128 = vstv %s124
    %v129 = vadd.f32 %v128, %v127
    %s130 = sld [smem:[#allocation2 + $0x1d]]
    %v131 = vstv %s130
    %v132 = vmul.f32 %v131, %v24
    %v133 = vadd.f32 %v129, %v132
    %v134 = vmax.f32 %v133, 0.0
    %s135 = sld [smem:[#allocation2 + $0x1e]]
    %s136 = sld [smem:[#allocation2 + $0x23]]
    %v137 = vstv %s136
    %v138 = vmul.f32 %v137, %v35
    %v139 = vstv %s135
    %v140 = vadd.f32 %v139, %v138
    %s141 = sld [smem:[#allocation2 + $0x24]]
    %v142 = vstv %s141
    %v143 = vmul.f32 %v142, %v46
    %v144 = vadd.f32 %v140, %v143
    %s145 = sld [smem:[#allocation2 + $0x25]]
    %v146 = vstv %s145
    %v147 = vmul.f32 %v146, %v57
    %v148 = vadd.f32 %v144, %v147
    %s149 = sld [smem:[#allocation2 + $0x26]]
    %v150 = vstv %s149
    %v151 = vmul.f32 %v150, %v68
    %v152 = vadd.f32 %v148, %v151
    %s153 = sld [smem:[#allocation2 + $0x27]]
    %v154 = vstv %s153
    %v155 = vmul.f32 %v154, %v79
    %v156 = vadd.f32 %v152, %v155
    %s157 = sld [smem:[#allocation2 + $0x28]]
    %v158 = vstv %s157
    %v159 = vmul.f32 %v158, %v90
    %v160 = vadd.f32 %v156, %v159
    %s161 = sld [smem:[#allocation2 + $0x29]]
    %v162 = vstv %s161
    %v163 = vmul.f32 %v162, %v101
    %v164 = vadd.f32 %v160, %v163
    %s165 = sld [smem:[#allocation2 + $0x2a]]
    %v166 = vstv %s165
    %v167 = vmul.f32 %v166, %v112
    %v168 = vadd.f32 %v164, %v167
    %s169 = sld [smem:[#allocation2 + $0x2b]]
    %v170 = vstv %s169
    %v171 = vmul.f32 %v170, %v123
    %v172 = vadd.f32 %v168, %v171
    %s173 = sld [smem:[#allocation2 + $0x2c]]
    %v174 = vstv %s173
    %v175 = vmul.f32 %v174, %v134
    %v176 = vadd.f32 %v172, %v175
    %v177 = vmax.f32 %v176, 0.0
    %s178 = sld [smem:[#allocation2 + $0x1f]]
    %s179 = sld [smem:[#allocation2 + $0x2d]]
    %v180 = vstv %s179
    %v181 = vmul.f32 %v180, %v35
    %v182 = vstv %s178
    %v183 = vadd.f32 %v182, %v181
    %s184 = sld [smem:[#allocation2 + $0x2e]]
    %v185 = vstv %s184
    %v186 = vmul.f32 %v185, %v46
    %v187 = vadd.f32 %v183, %v186
    %s188 = sld [smem:[#allocation2 + $0x2f]]
    %v189 = vstv %s188
    %v190 = vmul.f32 %v189, %v57
    %v191 = vadd.f32 %v187, %v190
    %s192 = sld [smem:[#allocation2 + $0x30]]
    %v193 = vstv %s192
    %v194 = vmul.f32 %v193, %v68
    %v195 = vadd.f32 %v191, %v194
    %s196 = sld [smem:[#allocation2 + $0x31]]
    %v197 = vstv %s196
    %v198 = vmul.f32 %v197, %v79
    %v199 = vadd.f32 %v195, %v198
    %s200 = sld [smem:[#allocation2 + $0x32]]
    %v201 = vstv %s200
    %v202 = vmul.f32 %v201, %v90
    %v203 = vadd.f32 %v199, %v202
    %s204 = sld [smem:[#allocation2 + $0x33]]
    %v205 = vstv %s204
    %v206 = vmul.f32 %v205, %v101
    %v207 = vadd.f32 %v203, %v206
    %s208 = sld [smem:[#allocation2 + $0x34]]
    %v209 = vstv %s208
    %v210 = vmul.f32 %v209, %v112
    %v211 = vadd.f32 %v207, %v210
    %s212 = sld [smem:[#allocation2 + $0x35]]
    %v213 = vstv %s212
    %v214 = vmul.f32 %v213, %v123
    %v215 = vadd.f32 %v211, %v214
    %s216 = sld [smem:[#allocation2 + $0x36]]
    %v217 = vstv %s216
    %v218 = vmul.f32 %v217, %v134
    %v219 = vadd.f32 %v215, %v218
    %v220 = vmax.f32 %v219, 0.0
    %s221 = sld [smem:[#allocation2 + $0x20]]
    %s222 = sld [smem:[#allocation2 + $0x37]]
    %v223 = vstv %s222
    %v224 = vmul.f32 %v223, %v35
    %v225 = vstv %s221
    %v226 = vadd.f32 %v225, %v224
    %s227 = sld [smem:[#allocation2 + $0x38]]
    %v228 = vstv %s227
    %v229 = vmul.f32 %v228, %v46
    %v230 = vadd.f32 %v226, %v229
    %s231 = sld [smem:[#allocation2 + $0x39]]
    %v232 = vstv %s231
    %v233 = vmul.f32 %v232, %v57
    %v234 = vadd.f32 %v230, %v233
    %s235 = sld [smem:[#allocation2 + $0x3a]]
    %v236 = vstv %s235
    %v237 = vmul.f32 %v236, %v68
    %v238 = vadd.f32 %v234, %v237
    %s239 = sld [smem:[#allocation2 + $0x3b]]
    %v240 = vstv %s239
    %v241 = vmul.f32 %v240, %v79
    %v242 = vadd.f32 %v238, %v241
    %s243 = sld [smem:[#allocation2 + $0x3c]]
    %v244 = vstv %s243
    %v245 = vmul.f32 %v244, %v90
    %v246 = vadd.f32 %v242, %v245
    %s247 = sld [smem:[#allocation2 + $0x3d]]
    %v248 = vstv %s247
    %v249 = vmul.f32 %v248, %v101
    %v250 = vadd.f32 %v246, %v249
    %s251 = sld [smem:[#allocation2 + $0x3e]]
    %v252 = vstv %s251
    %v253 = vmul.f32 %v252, %v112
    %v254 = vadd.f32 %v250, %v253
    %s255 = sld [smem:[#allocation2 + $0x3f]]
    %v256 = vstv %s255
    %v257 = vmul.f32 %v256, %v123
    %v258 = vadd.f32 %v254, %v257
    %s259 = sld [smem:[#allocation2 + $0x40]]
    %v260 = vstv %s259
    %v261 = vmul.f32 %v260, %v134
    %v262 = vadd.f32 %v258, %v261
    %v263 = vmax.f32 %v262, 0.0
    %s264 = sld [smem:[#allocation2 + $0x21]]
    %s265 = sld [smem:[#allocation2 + $0x41]]
    %v266 = vstv %s265
    %v267 = vmul.f32 %v266, %v35
    %v268 = vstv %s264
    %v269 = vadd.f32 %v268, %v267
    %s270 = sld [smem:[#allocation2 + $0x42]]
    %v271 = vstv %s270
    %v272 = vmul.f32 %v271, %v46
    %v273 = vadd.f32 %v269, %v272
    %s274 = sld [smem:[#allocation2 + $0x43]]
    %v275 = vstv %s274
    %v276 = vmul.f32 %v275, %v57
    %v277 = vadd.f32 %v273, %v276
    %s278 = sld [smem:[#allocation2 + $0x44]]
    %v279 = vstv %s278
    %v280 = vmul.f32 %v279, %v68
    %v281 = vadd.f32 %v277, %v280
    %s282 = sld [smem:[#allocation2 + $0x45]]
    %v283 = vstv %s282
    %v284 = vmul.f32 %v283, %v79
    %v285 = vadd.f32 %v281, %v284
    %s286 = sld [smem:[#allocation2 + $0x46]]
    %v287 = vstv %s286
    %v288 = vmul.f32 %v287, %v90
    %v289 = vadd.f32 %v285, %v288
    %s290 = sld [smem:[#allocation2 + $0x47]]
    %v291 = vstv %s290
    %v292 = vmul.f32 %v291, %v101
    %v293 = vadd.f32 %v289, %v292
    %s294 = sld [smem:[#allocation2 + $0x48]]
    %v295 = vstv %s294
    %v296 = vmul.f32 %v295, %v112
    %v297 = vadd.f32 %v293, %v296
    %s298 = sld [smem:[#allocation2 + $0x49]]
    %v299 = vstv %s298
    %v300 = vmul.f32 %v299, %v123
    %v301 = vadd.f32 %v297, %v300
    %s302 = sld [smem:[#allocation2 + $0x4a]]
    %v303 = vstv %s302
    %v304 = vmul.f32 %v303, %v134
    %v305 = vadd.f32 %v301, %v304
    %v306 = vmax.f32 %v305, 0.0
    %s307 = sld [smem:[#allocation2 + $0x22]]
    %s308 = sld [smem:[#allocation2 + $0x4b]]
    %v309 = vstv %s308
    %v310 = vmul.f32 %v309, %v35
    %v311 = vstv %s307
    %v312 = vadd.f32 %v311, %v310
    %s313 = sld [smem:[#allocation2 + $0x4c]]
    %v314 = vstv %s313
    %v315 = vmul.f32 %v314, %v46
    %v316 = vadd.f32 %v312, %v315
    %s317 = sld [smem:[#allocation2 + $0x4d]]
    %v318 = vstv %s317
    %v319 = vmul.f32 %v318, %v57
    %v320 = vadd.f32 %v316, %v319
    %s321 = sld [smem:[#allocation2 + $0x4e]]
    %v322 = vstv %s321
    %v323 = vmul.f32 %v322, %v68
    %v324 = vadd.f32 %v320, %v323
    %s325 = sld [smem:[#allocation2 + $0x4f]]
    %v326 = vstv %s325
    %v327 = vmul.f32 %v326, %v79
    %v328 = vadd.f32 %v324, %v327
    %s329 = sld [smem:[#allocation2 + $0x50]]
    %v330 = vstv %s329
    %v331 = vmul.f32 %v330, %v90
    %v332 = vadd.f32 %v328, %v331
    %s333 = sld [smem:[#allocation2 + $0x51]]
    %v334 = vstv %s333
    %v335 = vmul.f32 %v334, %v101
    %v336 = vadd.f32 %v332, %v335
    %s337 = sld [smem:[#allocation2 + $0x52]]
    %v338 = vstv %s337
    %v339 = vmul.f32 %v338, %v112
    %v340 = vadd.f32 %v336, %v339
    %s341 = sld [smem:[#allocation2 + $0x53]]
    %v342 = vstv %s341
    %v343 = vmul.f32 %v342, %v123
    %v344 = vadd.f32 %v340, %v343
    %s345 = sld [smem:[#allocation2 + $0x54]]
    %v346 = vstv %s345
    %v347 = vmul.f32 %v346, %v134
    %v348 = vadd.f32 %v344, %v347
    %v349 = vmax.f32 %v348, 0.0
    %s350 = sld [smem:[#allocation2 + $0x55]]
    %s351 = sld [smem:[#allocation2 + $0x56]]
    %v352 = vstv %s351
    %v353 = vmul.f32 %v352, %v177
    %v354 = vstv %s350
    %v355 = vadd.f32 %v354, %v353
    %s356 = sld [smem:[#allocation2 + $0x57]]
    %v357 = vstv %s356
    %v358 = vmul.f32 %v357, %v220
    %v359 = vadd.f32 %v355, %v358
    %s360 = sld [smem:[#allocation2 + $0x58]]
    %v361 = vstv %s360
    %v362 = vmul.f32 %v361, %v263
    %v363 = vadd.f32 %v359, %v362
    %s364 = sld [smem:[#allocation2 + $0x59]]
    %v365 = vstv %s364
    %v366 = vmul.f32 %v365, %v306
    %v367 = vadd.f32 %v363, %v366
    %s368 = sld [smem:[#allocation2 + $0x5a]]
    %v369 = vstv %s368
    %v370 = vmul.f32 %v369, %v349
    %v371 = vadd.f32 %v367, %v370
    %v372 = vtanh.pop %v371
    %vm373 = vcmask 57344
    %374 = vst.msk [vmem:[#allocation5] sm:$0x1] %vm373, %v372
    // Predicated region
    $region14: #{tpu_custom_call.1} parent=1 // pred_check
      _
    $region15: #{tpu_custom_call.1} parent=1 // pred_check_branch
      %376 = sbr.rel (0) target = $region17
    $region16: #{tpu_custom_call.1} parent=1 // pred_region
      %s378 = ssub.s32 16, 16
      %379 = vsyncadd [#allocation3], %s378
      %s381 = sshll.u32 [#allocation5], 4
      %s382 = int_to_ptr.vmem [resolvable:$true] %s381
      %384 = dma.vmem_to_hbm [thread:$0]  %s382, 16, %s2, [#allocation3]
    $region17: #{tpu_custom_call.1} parent=1 // pred_fallthru
      _
    // Predicated region
    $region18: #{tpu_custom_call.1} parent=1 // pred_check
      _
    $region19: #{tpu_custom_call.1} parent=1 // pred_check_branch
      %386 = sbr.rel (0) target = $region21
    $region20: #{tpu_custom_call.1} parent=1 // pred_region
      %387 = dma.done [#allocation3], 16
    $region21: #{tpu_custom_call.1} parent=1 // pred_fallthru
      _
    %388 = vsyncpa [#allocation3], 1
    %389 = vsyncpa [#allocation4], 1

</llo_original>
